<compile_context>
chip_gen: v7x
topology: tpu7x:2x2x1
jax: 0.10.0
libtpu: 0.0.40
codegen_flags: <defaults>
</compile_context>

<pallas_src>
import functools

import numpy as np
import jax
import jax.numpy as jnp
from jax.experimental import pallas as pl
from jax.experimental.pallas import tpu as pltpu

HIDDEN = 16


def lstm_fc_kernel(x_ref, wih_ref, whh_ref, b_ref, wfc_ref, bfc_ref, out_ref,
                   *, mxu_dtype):
    """x_ref:   (T, B, 1)  time-major input (f32, VMEM).
    wih_ref: (1, 1, 4H) fused input weights, kernel gate order [i|f|o|g] (g cols x2).
    whh_ref: (H, 4H)    fused recurrent weights (for h @ W), same order/scaling.
    b_ref:   (1, 1, 4H) fused bias (b_ih + b_hh), same order/scaling.
    wfc_ref: (H, 1)     FC weight; bfc_ref: (1,) FC bias in SMEM.
    out_ref: (B, 1)     output."""
    T, B, _ = x_ref.shape
    H = whh_ref.shape[0]

    # Hoisted loop-invariant recurrent weights; cast once for the MXU.
    whh = whh_ref[...].astype(mxu_dtype)                          # (H, 4H)

    # Input projection + fused bias for every timestep. input_size == 1 so this is a
    # pure broadcast (no matmul); kept as a plain value (~1 vreg at B=2/T=8), no scratch.
    xw = x_ref[...] * wih_ref[...] + b_ref[...]                   # (T, B, 4H) f32

    h = jnp.zeros((B, H), jnp.float32)
    c = jnp.zeros((B, H), jnp.float32)

    # Statically unrolled recurrence (T is a small trace-time constant).
    for t in range(T):
        # One fused MXU matmul per step: bf16 operands, f32 accumulation.
        gates = jnp.dot(h.astype(mxu_dtype), whh,
                        preferred_element_type=jnp.float32) + xw[t]   # (B, 4H)
        # g-gate pre-activations were pre-scaled by 2 at repack time, so a single
        # sigmoid over the whole slab covers all four gates; tanh(z) = 2*sigmoid(2z)-1.
        s = jax.nn.sigmoid(gates)
        i = s[:, 0 * H:1 * H]
        f = s[:, 1 * H:2 * H]
        o = s[:, 2 * H:3 * H]
        g = 2.0 * s[:, 3 * H:4 * H] - 1.0
        # NOTE: the 16-lane sub-slices above may cost a few XLU lane rotations per step
        # to realign onto c/h (lanes 0..15); acceptable here per bundle-level review.
        c = f * c + i * g
        h = o * jnp.tanh(c)

    # FC on the last hidden state (scalar bias read from SMEM).
    out_ref[...] = (jnp.dot(h, wfc_ref[...], preferred_element_type=jnp.float32)
                    + bfc_ref[0])


def lstm_model_forward(x_btf, kernel_params, *, mxu_dtype=jnp.bfloat16):
    """x_btf: (B, T, 1) float32 (PyTorch batch_first layout)."""
    B, T, _ = x_btf.shape
    x_tbf = jnp.transpose(x_btf, (1, 0, 2))      # time-major (T, B, 1)
    wih, whh, b, wfc, bfc = kernel_params
    vmem = pl.BlockSpec(memory_space=pltpu.MemorySpace.VMEM)
    smem = pl.BlockSpec(memory_space=pltpu.MemorySpace.SMEM)
    return pl.pallas_call(
        functools.partial(lstm_fc_kernel, mxu_dtype=mxu_dtype),
        out_shape=jax.ShapeDtypeStruct((B, 1), jnp.float32),
        in_specs=[vmem, vmem, vmem, vmem, vmem, smem],
        out_specs=vmem,
    )(x_tbf, wih, whh, b, wfc, bfc)


def init_params(key):
    """Deterministic init mirroring PyTorch parameter shapes (uniform(-1/sqrt(H), 1/sqrt(H)))."""
    H = HIDDEN
    bound = 1.0 / np.sqrt(H)
    ks = jax.random.split(key, 6)
    w_ih = jax.random.uniform(ks[0], (4 * H, 1), jnp.float32, -bound, bound)  # weight_ih_l0
    w_hh = jax.random.uniform(ks[1], (4 * H, H), jnp.float32, -bound, bound)  # weight_hh_l0
    b_ih = jax.random.uniform(ks[2], (4 * H,), jnp.float32, -bound, bound)    # bias_ih_l0
    b_hh = jax.random.uniform(ks[3], (4 * H,), jnp.float32, -bound, bound)    # bias_hh_l0
    w_fc = jax.random.uniform(ks[4], (1, H), jnp.float32, -bound, bound)      # fc.weight
    b_fc = jax.random.uniform(ks[5], (1,), jnp.float32, -bound, bound)        # fc.bias

    torch_like = (w_ih, w_hh, b_ih, b_hh, w_fc, b_fc)

    # Repack for the fused kernel:
    #  * PyTorch gate order is (i, f, g, o); kernel gate order is (i, f, o, g)
    #    (perm [0,1,3,2]) so the sigmoid-friendly gates are contiguous.
    #  * The g-gate columns (kernel slot 3) are pre-scaled by 2 so the kernel can use
    #    tanh(z) = 2*sigmoid(2z) - 1 and run ONE sigmoid over all gates.
    perm = jnp.array([0, 1, 3, 2], dtype=jnp.int32)
    scale2 = jnp.array([1.0, 1.0, 1.0, 2.0], dtype=jnp.float32)   # kernel order [i|f|o|g]

    wih = (w_ih.reshape(4, H)[perm] * scale2[:, None]).reshape(1, 1, 4 * H)
    whh = jnp.transpose(w_hh.reshape(4, H, H)[perm] * scale2[:, None, None],
                        (2, 0, 1)).reshape(H, 4 * H)              # gates = h @ whh
    b = ((b_ih + b_hh).reshape(4, H)[perm] * scale2[:, None]).reshape(1, 1, 4 * H)
    wfc = w_fc.T                                                  # (H, 1)
    bfc = b_fc.reshape(1,)                                        # (1,) -> SMEM scalar
    kernel_params = (wih, whh, b, wfc, bfc)
    return torch_like, kernel_params


def lstm_model_ref(x, torch_like):
    """Pure-JAX reference matching PyTorch nn.LSTM (i,f,g,o gate order) + Linear."""
    w_ih, w_hh, b_ih, b_hh, w_fc, b_fc = torch_like
    B, T, _ = x.shape
    H = HIDDEN

    def step(carry, x_t):
        h, c = carry
        gates = x_t @ w_ih.T + h @ w_hh.T + b_ih + b_hh
        i = jax.nn.sigmoid(gates[:, 0:H])
        f = jax.nn.sigmoid(gates[:, H:2 * H])
        g = jnp.tanh(gates[:, 2 * H:3 * H])
        o = jax.nn.sigmoid(gates[:, 3 * H:4 * H])
        c = f * c + i * g
        h = o * jnp.tanh(c)
        return (h, c), None

    h0 = jnp.zeros((B, H), jnp.float32)
    c0 = jnp.zeros((B, H), jnp.float32)
    (h_last, _), _ = jax.lax.scan(step, (h0, c0), jnp.transpose(x, (1, 0, 2)))
    return h_last @ w_fc.T + b_fc


if __name__ == "__main__":
    key = jax.random.PRNGKey(0)
    k_x, k_p = jax.random.split(key)

    B, T = 2, 8
    x = jax.random.normal(k_x, (B, T, 1), dtype=jnp.float32)  # (batch, seq, input_size=1)

    torch_like, kernel_params = init_params(k_p)
    ref = jax.block_until_ready(lstm_model_ref(x, torch_like))

    # Structural validation: f32 MXU operands (tight tolerance; exercises the gate
    # permutation, tanh-fold, and FC exactly).
    out_f32 = jax.block_until_ready(
        lstm_model_forward(x, kernel_params, mxu_dtype=jnp.float32))
    np.testing.assert_allclose(np.asarray(out_f32), np.asarray(ref), rtol=1e-4, atol=1e-4)

    # Production path: bf16 MXU operands, f32 accumulation/activations.
    out = jax.block_until_ready(
        lstm_model_forward(x, kernel_params, mxu_dtype=jnp.bfloat16))
    np.testing.assert_allclose(np.asarray(out), np.asarray(ref), rtol=5e-3, atol=5e-3)

    assert out.shape == (B, 1)
    print("KERNEL_OK")
</pallas_src>

<mosaic_0001>
module attributes {stable_mosaic.version = 11 : i64} {
  func.func @lstm_fc_kernel(%arg0: memref<8x2x1xf32, #tpu.memory_space<vmem>>, %arg1: memref<1x1x64xf32, #tpu.memory_space<vmem>>, %arg2: memref<16x64xf32, #tpu.memory_space<vmem>>, %arg3: memref<1x1x64xf32, #tpu.memory_space<vmem>>, %arg4: memref<16x1xf32, #tpu.memory_space<vmem>>, %arg5: memref<1xf32, #tpu.memory_space<smem>>, %arg6: memref<2x1xf32, #tpu.memory_space<vmem>>) attributes {dimension_semantics = [], scalar_prefetch = 0 : i64, scratch_operands = 0 : i64, tpu.core_type = #tpu.core_type<tc>} {
    %c0 = arith.constant 0 : index
    %c0_0 = arith.constant 0 : index
    %0 = vector.load %arg2[%c0, %c0_0] : memref<16x64xf32, #tpu.memory_space<vmem>>, vector<16x64xf32>
    %c0_1 = arith.constant 0 : index
    %c0_2 = arith.constant 0 : index
    %c0_3 = arith.constant 0 : index
    %1 = vector.load %arg0[%c0_1, %c0_2, %c0_3] : memref<8x2x1xf32, #tpu.memory_space<vmem>>, vector<8x2x1xf32>
    %c0_4 = arith.constant 0 : index
    %c0_5 = arith.constant 0 : index
    %c0_6 = arith.constant 0 : index
    %2 = vector.load %arg1[%c0_4, %c0_5, %c0_6] : memref<1x1x64xf32, #tpu.memory_space<vmem>>, vector<1x1x64xf32>
    %3 = vector.broadcast %1 : vector<8x2x1xf32> to vector<8x2x64xf32>
    %4 = vector.broadcast %2 : vector<1x1x64xf32> to vector<8x2x64xf32>
    %5 = arith.mulf %3, %4 : vector<8x2x64xf32>
    %c0_7 = arith.constant 0 : index
    %c0_8 = arith.constant 0 : index
    %c0_9 = arith.constant 0 : index
    %6 = vector.load %arg3[%c0_7, %c0_8, %c0_9] : memref<1x1x64xf32, #tpu.memory_space<vmem>>, vector<1x1x64xf32>
    %7 = vector.broadcast %6 : vector<1x1x64xf32> to vector<8x2x64xf32>
    %8 = arith.addf %5, %7 : vector<8x2x64xf32>
    %cst = arith.constant 0.000000e+00 : f32
    %9 = vector.broadcast %cst : f32 to vector<2x16xf32>
    %cst_10 = arith.constant 0.000000e+00 : f32
    %10 = vector.broadcast %cst_10 : f32 to vector<2x16xf32>
    %cst_11 = arith.constant dense<0.000000e+00> : vector<2x64xf32>
    %11 = tpu.matmul %9, %0, %cst_11 {dimension_numbers = #tpu.dot_dimension_numbers<[1], [0], [0], [1], [0, 0, 1, 1], [], []>} : vector<2x16xf32>, vector<16x64xf32>, vector<2x64xf32> -> vector<2x64xf32>
    %12 = vector.extract_strided_slice %8 {offsets = [0, 0, 0], sizes = [1, 2, 64], strides = [1, 1, 1]} : vector<8x2x64xf32> to vector<1x2x64xf32>
    %13 = vector.shape_cast %12 : vector<1x2x64xf32> to vector<2x64xf32>
    %14 = arith.addf %11, %13 : vector<2x64xf32>
    %15 = arith.negf %14 : vector<2x64xf32>
    %16 = math.exp %15 : vector<2x64xf32>
    %cst_12 = arith.constant 1.000000e+00 : f32
    %17 = vector.broadcast %cst_12 : f32 to vector<2x64xf32>
    %18 = arith.addf %17, %16 : vector<2x64xf32>
    %19 = arith.divf %17, %18 : vector<2x64xf32>
    %20 = vector.extract_strided_slice %19 {offsets = [0, 0], sizes = [2, 16], strides = [1, 1]} : vector<2x64xf32> to vector<2x16xf32>
    %21 = vector.extract_strided_slice %19 {offsets = [0, 16], sizes = [2, 16], strides = [1, 1]} : vector<2x64xf32> to vector<2x16xf32>
    %22 = vector.extract_strided_slice %19 {offsets = [0, 32], sizes = [2, 16], strides = [1, 1]} : vector<2x64xf32> to vector<2x16xf32>
    %23 = vector.extract_strided_slice %19 {offsets = [0, 48], sizes = [2, 16], strides = [1, 1]} : vector<2x64xf32> to vector<2x16xf32>
    %cst_13 = arith.constant 2.000000e+00 : f32
    %24 = vector.broadcast %cst_13 : f32 to vector<2x16xf32>
    %25 = arith.mulf %24, %23 : vector<2x16xf32>
    %cst_14 = arith.constant 1.000000e+00 : f32
    %26 = vector.broadcast %cst_14 : f32 to vector<2x16xf32>
    %27 = arith.subf %25, %26 : vector<2x16xf32>
    %28 = arith.mulf %21, %10 : vector<2x16xf32>
    %29 = arith.mulf %20, %27 : vector<2x16xf32>
    %30 = arith.addf %28, %29 : vector<2x16xf32>
    %31 = math.tanh %30 : vector<2x16xf32>
    %32 = arith.mulf %22, %31 : vector<2x16xf32>
    %cst_15 = arith.constant dense<0.000000e+00> : vector<2x64xf32>
    %33 = tpu.matmul %32, %0, %cst_15 {dimension_numbers = #tpu.dot_dimension_numbers<[1], [0], [0], [1], [0, 0, 1, 1], [], []>} : vector<2x16xf32>, vector<16x64xf32>, vector<2x64xf32> -> vector<2x64xf32>
    %34 = vector.extract_strided_slice %8 {offsets = [1, 0, 0], sizes = [1, 2, 64], strides = [1, 1, 1]} : vector<8x2x64xf32> to vector<1x2x64xf32>
    %35 = vector.shape_cast %34 : vector<1x2x64xf32> to vector<2x64xf32>
    %36 = arith.addf %33, %35 : vector<2x64xf32>
    %37 = arith.negf %36 : vector<2x64xf32>
    %38 = math.exp %37 : vector<2x64xf32>
    %cst_16 = arith.constant 1.000000e+00 : f32
    %39 = vector.broadcast %cst_16 : f32 to vector<2x64xf32>
    %40 = arith.addf %39, %38 : vector<2x64xf32>
    %41 = arith.divf %39, %40 : vector<2x64xf32>
    %42 = vector.extract_strided_slice %41 {offsets = [0, 0], sizes = [2, 16], strides = [1, 1]} : vector<2x64xf32> to vector<2x16xf32>
    %43 = vector.extract_strided_slice %41 {offsets = [0, 16], sizes = [2, 16], strides = [1, 1]} : vector<2x64xf32> to vector<2x16xf32>
    %44 = vector.extract_strided_slice %41 {offsets = [0, 32], sizes = [2, 16], strides = [1, 1]} : vector<2x64xf32> to vector<2x16xf32>
    %45 = vector.extract_strided_slice %41 {offsets = [0, 48], sizes = [2, 16], strides = [1, 1]} : vector<2x64xf32> to vector<2x16xf32>
    %cst_17 = arith.constant 2.000000e+00 : f32
    %46 = vector.broadcast %cst_17 : f32 to vector<2x16xf32>
    %47 = arith.mulf %46, %45 : vector<2x16xf32>
    %cst_18 = arith.constant 1.000000e+00 : f32
    %48 = vector.broadcast %cst_18 : f32 to vector<2x16xf32>
    %49 = arith.subf %47, %48 : vector<2x16xf32>
    %50 = arith.mulf %43, %30 : vector<2x16xf32>
    %51 = arith.mulf %42, %49 : vector<2x16xf32>
    %52 = arith.addf %50, %51 : vector<2x16xf32>
    %53 = math.tanh %52 : vector<2x16xf32>
    %54 = arith.mulf %44, %53 : vector<2x16xf32>
    %cst_19 = arith.constant dense<0.000000e+00> : vector<2x64xf32>
    %55 = tpu.matmul %54, %0, %cst_19 {dimension_numbers = #tpu.dot_dimension_numbers<[1], [0], [0], [1], [0, 0, 1, 1], [], []>} : vector<2x16xf32>, vector<16x64xf32>, vector<2x64xf32> -> vector<2x64xf32>
    %56 = vector.extract_strided_slice %8 {offsets = [2, 0, 0], sizes = [1, 2, 64], strides = [1, 1, 1]} : vector<8x2x64xf32> to vector<1x2x64xf32>
    %57 = vector.shape_cast %56 : vector<1x2x64xf32> to vector<2x64xf32>
    %58 = arith.addf %55, %57 : vector<2x64xf32>
    %59 = arith.negf %58 : vector<2x64xf32>
    %60 = math.exp %59 : vector<2x64xf32>
    %cst_20 = arith.constant 1.000000e+00 : f32
    %61 = vector.broadcast %cst_20 : f32 to vector<2x64xf32>
    %62 = arith.addf %61, %60 : vector<2x64xf32>
    %63 = arith.divf %61, %62 : vector<2x64xf32>
    %64 = vector.extract_strided_slice %63 {offsets = [0, 0], sizes = [2, 16], strides = [1, 1]} : vector<2x64xf32> to vector<2x16xf32>
    %65 = vector.extract_strided_slice %63 {offsets = [0, 16], sizes = [2, 16], strides = [1, 1]} : vector<2x64xf32> to vector<2x16xf32>
    %66 = vector.extract_strided_slice %63 {offsets = [0, 32], sizes = [2, 16], strides = [1, 1]} : vector<2x64xf32> to vector<2x16xf32>
    %67 = vector.extract_strided_slice %63 {offsets = [0, 48], sizes = [2, 16], strides = [1, 1]} : vector<2x64xf32> to vector<2x16xf32>
    %cst_21 = arith.constant 2.000000e+00 : f32
    %68 = vector.broadcast %cst_21 : f32 to vector<2x16xf32>
    %69 = arith.mulf %68, %67 : vector<2x16xf32>
    %cst_22 = arith.constant 1.000000e+00 : f32
    %70 = vector.broadcast %cst_22 : f32 to vector<2x16xf32>
    %71 = arith.subf %69, %70 : vector<2x16xf32>
    %72 = arith.mulf %65, %52 : vector<2x16xf32>
    %73 = arith.mulf %64, %71 : vector<2x16xf32>
    %74 = arith.addf %72, %73 : vector<2x16xf32>
    %75 = math.tanh %74 : vector<2x16xf32>
    %76 = arith.mulf %66, %75 : vector<2x16xf32>
    %cst_23 = arith.constant dense<0.000000e+00> : vector<2x64xf32>
    %77 = tpu.matmul %76, %0, %cst_23 {dimension_numbers = #tpu.dot_dimension_numbers<[1], [0], [0], [1], [0, 0, 1, 1], [], []>} : vector<2x16xf32>, vector<16x64xf32>, vector<2x64xf32> -> vector<2x64xf32>
    %78 = vector.extract_strided_slice %8 {offsets = [3, 0, 0], sizes = [1, 2, 64], strides = [1, 1, 1]} : vector<8x2x64xf32> to vector<1x2x64xf32>
    %79 = vector.shape_cast %78 : vector<1x2x64xf32> to vector<2x64xf32>
    %80 = arith.addf %77, %79 : vector<2x64xf32>
    %81 = arith.negf %80 : vector<2x64xf32>
    %82 = math.exp %81 : vector<2x64xf32>
    %cst_24 = arith.constant 1.000000e+00 : f32
    %83 = vector.broadcast %cst_24 : f32 to vector<2x64xf32>
    %84 = arith.addf %83, %82 : vector<2x64xf32>
    %85 = arith.divf %83, %84 : vector<2x64xf32>
    %86 = vector.extract_strided_slice %85 {offsets = [0, 0], sizes = [2, 16], strides = [1, 1]} : vector<2x64xf32> to vector<2x16xf32>
    %87 = vector.extract_strided_slice %85 {offsets = [0, 16], sizes = [2, 16], strides = [1, 1]} : vector<2x64xf32> to vector<2x16xf32>
    %88 = vector.extract_strided_slice %85 {offsets = [0, 32], sizes = [2, 16], strides = [1, 1]} : vector<2x64xf32> to vector<2x16xf32>
    %89 = vector.extract_strided_slice %85 {offsets = [0, 48], sizes = [2, 16], strides = [1, 1]} : vector<2x64xf32> to vector<2x16xf32>
    %cst_25 = arith.constant 2.000000e+00 : f32
    %90 = vector.broadcast %cst_25 : f32 to vector<2x16xf32>
    %91 = arith.mulf %90, %89 : vector<2x16xf32>
    %cst_26 = arith.constant 1.000000e+00 : f32
    %92 = vector.broadcast %cst_26 : f32 to vector<2x16xf32>
    %93 = arith.subf %91, %92 : vector<2x16xf32>
    %94 = arith.mulf %87, %74 : vector<2x16xf32>
    %95 = arith.mulf %86, %93 : vector<2x16xf32>
    %96 = arith.addf %94, %95 : vector<2x16xf32>
    %97 = math.tanh %96 : vector<2x16xf32>
    %98 = arith.mulf %88, %97 : vector<2x16xf32>
    %cst_27 = arith.constant dense<0.000000e+00> : vector<2x64xf32>
    %99 = tpu.matmul %98, %0, %cst_27 {dimension_numbers = #tpu.dot_dimension_numbers<[1], [0], [0], [1], [0, 0, 1, 1], [], []>} : vector<2x16xf32>, vector<16x64xf32>, vector<2x64xf32> -> vector<2x64xf32>
    %100 = vector.extract_strided_slice %8 {offsets = [4, 0, 0], sizes = [1, 2, 64], strides = [1, 1, 1]} : vector<8x2x64xf32> to vector<1x2x64xf32>
    %101 = vector.shape_cast %100 : vector<1x2x64xf32> to vector<2x64xf32>
    %102 = arith.addf %99, %101 : vector<2x64xf32>
    %103 = arith.negf %102 : vector<2x64xf32>
    %104 = math.exp %103 : vector<2x64xf32>
    %cst_28 = arith.constant 1.000000e+00 : f32
    %105 = vector.broadcast %cst_28 : f32 to vector<2x64xf32>
    %106 = arith.addf %105, %104 : vector<2x64xf32>
    %107 = arith.divf %105, %106 : vector<2x64xf32>
    %108 = vector.extract_strided_slice %107 {offsets = [0, 0], sizes = [2, 16], strides = [1, 1]} : vector<2x64xf32> to vector<2x16xf32>
    %109 = vector.extract_strided_slice %107 {offsets = [0, 16], sizes = [2, 16], strides = [1, 1]} : vector<2x64xf32> to vector<2x16xf32>
    %110 = vector.extract_strided_slice %107 {offsets = [0, 32], sizes = [2, 16], strides = [1, 1]} : vector<2x64xf32> to vector<2x16xf32>
    %111 = vector.extract_strided_slice %107 {offsets = [0, 48], sizes = [2, 16], strides = [1, 1]} : vector<2x64xf32> to vector<2x16xf32>
    %cst_29 = arith.constant 2.000000e+00 : f32
    %112 = vector.broadcast %cst_29 : f32 to vector<2x16xf32>
    %113 = arith.mulf %112, %111 : vector<2x16xf32>
    %cst_30 = arith.constant 1.000000e+00 : f32
    %114 = vector.broadcast %cst_30 : f32 to vector<2x16xf32>
    %115 = arith.subf %113, %114 : vector<2x16xf32>
    %116 = arith.mulf %109, %96 : vector<2x16xf32>
    %117 = arith.mulf %108, %115 : vector<2x16xf32>
    %118 = arith.addf %116, %117 : vector<2x16xf32>
    %119 = math.tanh %118 : vector<2x16xf32>
    %120 = arith.mulf %110, %119 : vector<2x16xf32>
    %cst_31 = arith.constant dense<0.000000e+00> : vector<2x64xf32>
    %121 = tpu.matmul %120, %0, %cst_31 {dimension_numbers = #tpu.dot_dimension_numbers<[1], [0], [0], [1], [0, 0, 1, 1], [], []>} : vector<2x16xf32>, vector<16x64xf32>, vector<2x64xf32> -> vector<2x64xf32>
    %122 = vector.extract_strided_slice %8 {offsets = [5, 0, 0], sizes = [1, 2, 64], strides = [1, 1, 1]} : vector<8x2x64xf32> to vector<1x2x64xf32>
    %123 = vector.shape_cast %122 : vector<1x2x64xf32> to vector<2x64xf32>
    %124 = arith.addf %121, %123 : vector<2x64xf32>
    %125 = arith.negf %124 : vector<2x64xf32>
    %126 = math.exp %125 : vector<2x64xf32>
    %cst_32 = arith.constant 1.000000e+00 : f32
    %127 = vector.broadcast %cst_32 : f32 to vector<2x64xf32>
    %128 = arith.addf %127, %126 : vector<2x64xf32>
    %129 = arith.divf %127, %128 : vector<2x64xf32>
    %130 = vector.extract_strided_slice %129 {offsets = [0, 0], sizes = [2, 16], strides = [1, 1]} : vector<2x64xf32> to vector<2x16xf32>
    %131 = vector.extract_strided_slice %129 {offsets = [0, 16], sizes = [2, 16], strides = [1, 1]} : vector<2x64xf32> to vector<2x16xf32>
    %132 = vector.extract_strided_slice %129 {offsets = [0, 32], sizes = [2, 16], strides = [1, 1]} : vector<2x64xf32> to vector<2x16xf32>
    %133 = vector.extract_strided_slice %129 {offsets = [0, 48], sizes = [2, 16], strides = [1, 1]} : vector<2x64xf32> to vector<2x16xf32>
    %cst_33 = arith.constant 2.000000e+00 : f32
    %134 = vector.broadcast %cst_33 : f32 to vector<2x16xf32>
    %135 = arith.mulf %134, %133 : vector<2x16xf32>
    %cst_34 = arith.constant 1.000000e+00 : f32
    %136 = vector.broadcast %cst_34 : f32 to vector<2x16xf32>
    %137 = arith.subf %135, %136 : vector<2x16xf32>
    %138 = arith.mulf %131, %118 : vector<2x16xf32>
    %139 = arith.mulf %130, %137 : vector<2x16xf32>
    %140 = arith.addf %138, %139 : vector<2x16xf32>
    %141 = math.tanh %140 : vector<2x16xf32>
    %142 = arith.mulf %132, %141 : vector<2x16xf32>
    %cst_35 = arith.constant dense<0.000000e+00> : vector<2x64xf32>
    %143 = tpu.matmul %142, %0, %cst_35 {dimension_numbers = #tpu.dot_dimension_numbers<[1], [0], [0], [1], [0, 0, 1, 1], [], []>} : vector<2x16xf32>, vector<16x64xf32>, vector<2x64xf32> -> vector<2x64xf32>
    %144 = vector.extract_strided_slice %8 {offsets = [6, 0, 0], sizes = [1, 2, 64], strides = [1, 1, 1]} : vector<8x2x64xf32> to vector<1x2x64xf32>
    %145 = vector.shape_cast %144 : vector<1x2x64xf32> to vector<2x64xf32>
    %146 = arith.addf %143, %145 : vector<2x64xf32>
    %147 = arith.negf %146 : vector<2x64xf32>
    %148 = math.exp %147 : vector<2x64xf32>
    %cst_36 = arith.constant 1.000000e+00 : f32
    %149 = vector.broadcast %cst_36 : f32 to vector<2x64xf32>
    %150 = arith.addf %149, %148 : vector<2x64xf32>
    %151 = arith.divf %149, %150 : vector<2x64xf32>
    %152 = vector.extract_strided_slice %151 {offsets = [0, 0], sizes = [2, 16], strides = [1, 1]} : vector<2x64xf32> to vector<2x16xf32>
    %153 = vector.extract_strided_slice %151 {offsets = [0, 16], sizes = [2, 16], strides = [1, 1]} : vector<2x64xf32> to vector<2x16xf32>
    %154 = vector.extract_strided_slice %151 {offsets = [0, 32], sizes = [2, 16], strides = [1, 1]} : vector<2x64xf32> to vector<2x16xf32>
    %155 = vector.extract_strided_slice %151 {offsets = [0, 48], sizes = [2, 16], strides = [1, 1]} : vector<2x64xf32> to vector<2x16xf32>
    %cst_37 = arith.constant 2.000000e+00 : f32
    %156 = vector.broadcast %cst_37 : f32 to vector<2x16xf32>
    %157 = arith.mulf %156, %155 : vector<2x16xf32>
    %cst_38 = arith.constant 1.000000e+00 : f32
    %158 = vector.broadcast %cst_38 : f32 to vector<2x16xf32>
    %159 = arith.subf %157, %158 : vector<2x16xf32>
    %160 = arith.mulf %153, %140 : vector<2x16xf32>
    %161 = arith.mulf %152, %159 : vector<2x16xf32>
    %162 = arith.addf %160, %161 : vector<2x16xf32>
    %163 = math.tanh %162 : vector<2x16xf32>
    %164 = arith.mulf %154, %163 : vector<2x16xf32>
    %cst_39 = arith.constant dense<0.000000e+00> : vector<2x64xf32>
    %165 = tpu.matmul %164, %0, %cst_39 {dimension_numbers = #tpu.dot_dimension_numbers<[1], [0], [0], [1], [0, 0, 1, 1], [], []>} : vector<2x16xf32>, vector<16x64xf32>, vector<2x64xf32> -> vector<2x64xf32>
    %166 = vector.extract_strided_slice %8 {offsets = [7, 0, 0], sizes = [1, 2, 64], strides = [1, 1, 1]} : vector<8x2x64xf32> to vector<1x2x64xf32>
    %167 = vector.shape_cast %166 : vector<1x2x64xf32> to vector<2x64xf32>
    %168 = arith.addf %165, %167 : vector<2x64xf32>
    %169 = arith.negf %168 : vector<2x64xf32>
    %170 = math.exp %169 : vector<2x64xf32>
    %cst_40 = arith.constant 1.000000e+00 : f32
    %171 = vector.broadcast %cst_40 : f32 to vector<2x64xf32>
    %172 = arith.addf %171, %170 : vector<2x64xf32>
    %173 = arith.divf %171, %172 : vector<2x64xf32>
    %174 = vector.extract_strided_slice %173 {offsets = [0, 0], sizes = [2, 16], strides = [1, 1]} : vector<2x64xf32> to vector<2x16xf32>
    %175 = vector.extract_strided_slice %173 {offsets = [0, 16], sizes = [2, 16], strides = [1, 1]} : vector<2x64xf32> to vector<2x16xf32>
    %176 = vector.extract_strided_slice %173 {offsets = [0, 32], sizes = [2, 16], strides = [1, 1]} : vector<2x64xf32> to vector<2x16xf32>
    %177 = vector.extract_strided_slice %173 {offsets = [0, 48], sizes = [2, 16], strides = [1, 1]} : vector<2x64xf32> to vector<2x16xf32>
    %cst_41 = arith.constant 2.000000e+00 : f32
    %178 = vector.broadcast %cst_41 : f32 to vector<2x16xf32>
    %179 = arith.mulf %178, %177 : vector<2x16xf32>
    %cst_42 = arith.constant 1.000000e+00 : f32
    %180 = vector.broadcast %cst_42 : f32 to vector<2x16xf32>
    %181 = arith.subf %179, %180 : vector<2x16xf32>
    %182 = arith.mulf %175, %162 : vector<2x16xf32>
    %183 = arith.mulf %174, %181 : vector<2x16xf32>
    %184 = arith.addf %182, %183 : vector<2x16xf32>
    %185 = math.tanh %184 : vector<2x16xf32>
    %186 = arith.mulf %176, %185 : vector<2x16xf32>
    %c0_43 = arith.constant 0 : index
    %c0_44 = arith.constant 0 : index
    %187 = vector.load %arg4[%c0_43, %c0_44] : memref<16x1xf32, #tpu.memory_space<vmem>>, vector<16x1xf32>
    %cst_45 = arith.constant dense<0.000000e+00> : vector<2x1xf32>
    %188 = tpu.matmul %186, %187, %cst_45 {dimension_numbers = #tpu.dot_dimension_numbers<[1], [0], [0], [1], [0, 0, 1, 1], [], []>} : vector<2x16xf32>, vector<16x1xf32>, vector<2x1xf32> -> vector<2x1xf32>
    %c0_46 = arith.constant 0 : index
    %189 = memref.load %arg5[%c0_46] : memref<1xf32, #tpu.memory_space<smem>>
    %190 = vector.broadcast %189 : f32 to vector<2x1xf32>
    %191 = arith.addf %188, %190 : vector<2x1xf32>
    %c0_47 = arith.constant 0 : index
    %c0_48 = arith.constant 0 : index
    %192 = vector.load %arg6[%c0_47, %c0_48] : memref<2x1xf32, #tpu.memory_space<vmem>>, vector<2x1xf32>
    tpu.vector_store %arg6[%c0_47, %c0_48], %191 {strides = array<i32>} : memref<2x1xf32, #tpu.memory_space<vmem>>, vector<2x1xf32>,
    return
  }
}

</mosaic_0001>

<llo_original>
// kernel: tpu_custom_call.1
$region0: #{tpu_custom_call.1}
  #allocation0 [shape = 'u32[]', space=smem, size = 0x4, offset = 0x4, fixed_abs, tag = 'smem constant byte address 0x4 - core index']
  #allocation1 [shape = 'u32[144,128]{1,0:T(1,128)}', space=vmem, size = 0x12000, scoped, tag = 'internal scratch']
  #allocation2 [shape = 'f32[1]{0:T(128)S(6)}', space=smem, size = 0x200, scoped, tag = 'scoped memory for tpu_custom_call.1']
  %s0 = inlined_call_operand.vmem [shape: f32[8,2,1], index: 0, kind: input, shape index: {}]
  %s1 = inlined_call_operand.vmem [shape: f32[1,1,64], index: 1, kind: input, shape index: {}]
  %s2 = inlined_call_operand.vmem [shape: f32[16,64], index: 2, kind: input, shape index: {}]
  %s3 = inlined_call_operand.vmem [shape: f32[1,1,64], index: 3, kind: input, shape index: {}]
  %s4 = inlined_call_operand.vmem [shape: f32[16,1], index: 4, kind: input, shape index: {}]
  %s5 = inlined_call_operand.<no memory space> [shape: f32[1], index: 5, kind: input, shape index: {}]
  %s6 = inlined_call_operand.vmem [shape: f32[2,1], index: 6, kind: output, shape index: {}]
  %s7 = sld [smem:[#allocation0]]
  $region34: #{tpu_custom_call.1} parent=0
    _
  %s9 = ssub.s32 1, %s7
  %s10 = scalar_select 0, %s9, %s7
  %11 = sst [smem:[#allocation2]] %s5
  // Predicated region
  $region2: #{tpu_custom_call.1} parent=0 // pred_check
    _
  $region3: #{tpu_custom_call.1} parent=0 // pred_check_branch
    %13 = sbr.rel (0) target = $region5
  $region4: #{tpu_custom_call.1} parent=0 // pred_region
    _
  $region5: #{tpu_custom_call.1} parent=0 // pred_fallthru
    _
  // Predicated region
  $region6: #{tpu_custom_call.1} parent=0 // pred_check
    _
  $region7: #{tpu_custom_call.1} parent=0 // pred_check_branch
    %15 = sbr.rel (0) target = $region9
  $region8: #{tpu_custom_call.1} parent=0 // pred_region
    _
  $region9: #{tpu_custom_call.1} parent=0 // pred_fallthru
    _
  // Predicated region
  $region10: #{tpu_custom_call.1} parent=0 // pred_check
    _
  $region11: #{tpu_custom_call.1} parent=0 // pred_check_branch
    %17 = sbr.rel (0) target = $region13
  $region12: #{tpu_custom_call.1} parent=0 // pred_region
    _
  $region13: #{tpu_custom_call.1} parent=0 // pred_fallthru
    _
  // Predicated region
  $region14: #{tpu_custom_call.1} parent=0 // pred_check
    _
  $region15: #{tpu_custom_call.1} parent=0 // pred_check_branch
    %19 = sbr.rel (0) target = $region17
  $region16: #{tpu_custom_call.1} parent=0 // pred_region
    _
  $region17: #{tpu_custom_call.1} parent=0 // pred_fallthru
    _
  // Predicated region
  $region18: #{tpu_custom_call.1} parent=0 // pred_check
    _
  $region19: #{tpu_custom_call.1} parent=0 // pred_check_branch
    %21 = sbr.rel (0) target = $region21
  $region20: #{tpu_custom_call.1} parent=0 // pred_region
    _
  $region21: #{tpu_custom_call.1} parent=0 // pred_fallthru
    _
  // Predicated region
  $region22: #{tpu_custom_call.1} parent=0 // pred_check
    _
  $region23: #{tpu_custom_call.1} parent=0 // pred_check_branch
    %23 = sbr.rel (0) target = $region25
  $region24: #{tpu_custom_call.1} parent=0 // pred_region
    _
  $region25: #{tpu_custom_call.1} parent=0 // pred_fallthru
    _
  %v24 = vld [vmem:[%s2] sm:$0xff]
  %v25 = vld [vmem:[%s2 + $0x8] sm:$0xff]
  %v26 = vld [vmem:[%s0] sm:$0x3]
  %v27 = vld [vmem:[%s0 + $0x2] sm:$0x3]
  %v28 = vld [vmem:[%s0 + $0x4] sm:$0x3]
  %v29 = vld [vmem:[%s0 + $0x6] sm:$0x3]
  %v30 = vld [vmem:[%s0 + $0x8] sm:$0x3]
  %v31 = vld [vmem:[%s0 + $0xa] sm:$0x3]
  %v32 = vld [vmem:[%s0 + $0xc] sm:$0x3]
  %v33 = vld [vmem:[%s0 + $0xe] sm:$0x3]
  %v34 = vld [vmem:[%s1] sm:$0x1]
  %36 = vset.pattern.permute.xlu0 0
  %37 = vperm.xlu0 %36, %v26
  %v38 = vpop.permute.xlu0 %37
  %41 = vset.pattern.permute.xlu0 0
  %42 = vperm.xlu0 %41, %v27
  %v43 = vpop.permute.xlu0 %42
  %46 = vset.pattern.permute.xlu0 0
  %47 = vperm.xlu0 %46, %v28
  %v48 = vpop.permute.xlu0 %47
  %51 = vset.pattern.permute.xlu0 0
  %52 = vperm.xlu0 %51, %v29
  %v53 = vpop.permute.xlu0 %52
  %56 = vset.pattern.permute.xlu0 0
  %57 = vperm.xlu0 %56, %v30
  %v58 = vpop.permute.xlu0 %57
  %61 = vset.pattern.permute.xlu0 0
  %62 = vperm.xlu0 %61, %v31
  %v63 = vpop.permute.xlu0 %62
  %66 = vset.pattern.permute.xlu0 0
  %67 = vperm.xlu0 %66, %v32
  %v68 = vpop.permute.xlu0 %67
  %71 = vset.pattern.permute.xlu0 0
  %72 = vperm.xlu0 %71, %v33
  %v73 = vpop.permute.xlu0 %72
  %v76 = vlaneseq
  %v77 = vshrl.u32 %v76, 7
  %v78 = vsub.s32 0, %v77
  %v79 = vrot.slane %v34, %v78
  %v81 = vmul.f32 %v38, %v79
  %v82 = vmul.f32 %v43, %v79
  %v83 = vmul.f32 %v48, %v79
  %v84 = vmul.f32 %v53, %v79
  %v85 = vmul.f32 %v58, %v79
  %v86 = vmul.f32 %v63, %v79
  %v87 = vmul.f32 %v68, %v79
  %v88 = vmul.f32 %v73, %v79
  %v89 = vld [vmem:[%s3] sm:$0x1]
  %v91 = vlaneseq
  %v92 = vshrl.u32 %v91, 7
  %v93 = vsub.s32 0, %v92
  %v94 = vrot.slane %v89, %v93
  %v96 = vadd.f32 %v81, %v94
  %v97 = vadd.f32 %v82, %v94
  %v98 = vadd.f32 %v83, %v94
  %v99 = vadd.f32 %v84, %v94
  %v100 = vadd.f32 %v85, %v94
  %v101 = vadd.f32 %v86, %v94
  %v102 = vadd.f32 %v87, %v94
  %v103 = vadd.f32 %v88, %v94
  %vm104 = vcmask 130048
  %v106 = vsel %vm104, 0.0, 0
  %108 = vmatprep.subr.mxu0 0.0
  %109 = vmatpush1.msra.mxu0 %v24
  %110 = vmatprep.subr.mxu0 0.0
  %111 = vmatpush1.msra.mxu0 %v25
  %112 = vmatprep.subr.mxu0 0.0
  %113 = vmatpush1.msra.mxu0 0.0
  %114 = vmatprep.subr.mxu0 0.0
  %115 = vmatpush1.msra.mxu0 0.0
  %116 = vmatprep.subr.mxu0 0.0
  %117 = vmatpush1.msra.mxu0 0.0
  %118 = vmatprep.subr.mxu0 0.0
  %119 = vmatpush1.msra.mxu0 0.0
  %120 = vmatprep.subr.mxu0 0.0
  %121 = vmatpush1.msra.mxu0 0.0
  %122 = vmatprep.subr.mxu0 0.0
  %123 = vmatpush1.msra.mxu0 0.0
  %124 = vmatprep.subr.mxu0 0.0
  %125 = vmatpush1.msra.mxu0 0.0
  %126 = vmatprep.subr.mxu0 0.0
  %127 = vmatpush1.msra.mxu0 0.0
  %128 = vmatprep.subr.mxu0 0.0
  %129 = vmatpush1.msra.mxu0 0.0
  %130 = vmatprep.subr.mxu0 0.0
  %131 = vmatpush1.msra.mxu0 0.0
  %132 = vmatprep.subr.mxu0 0.0
  %133 = vmatpush1.msra.mxu0 0.0
  %134 = vmatprep.subr.mxu0 0.0
  %135 = vmatpush1.msra.mxu0 0.0
  %136 = vmatprep.subr.mxu0 0.0
  %137 = vmatpush1.msra.mxu0 0.0
  %138 = vmatprep.subr.mxu0 0.0
  %139 = vmatpush1.msra.mxu0 0.0
  %140 = vmatprep.subr.mxu0 0.0
  %141 = vmatpush1.msra.mxu0 0.0
  %142 = vmatprep.subr.mxu0 0.0
  %143 = vmatpush1.msra.mxu0 0.0
  %144 = vmatprep.subr.mxu0 0.0
  %145 = vmatpush1.msra.mxu0 0.0
  %146 = vmatprep.subr.mxu0 0.0
  %147 = vmatpush1.msra.mxu0 0.0
  %148 = vmatprep.subr.mxu0 0.0
  %149 = vmatpush1.msra.mxu0 0.0
  %150 = vmatprep.subr.mxu0 0.0
  %151 = vmatpush1.msra.mxu0 0.0
  %152 = vmatprep.subr.mxu0 0.0
  %153 = vmatpush1.msra.mxu0 0.0
  %154 = vmatprep.subr.mxu0 0.0
  %155 = vmatpush1.msra.mxu0 0.0
  %156 = vmatprep.subr.mxu0 0.0
  %157 = vmatpush1.msra.mxu0 0.0
  %158 = vmatprep.subr.mxu0 0.0
  %159 = vmatpush1.msra.mxu0 0.0
  %160 = vmatprep.subr.mxu0 0.0
  %161 = vmatpush1.msra.mxu0 0.0
  %162 = vmatprep.subr.mxu0 0.0
  %163 = vmatpush1.msra.mxu0 0.0
  %164 = vmatprep.subr.mxu0 0.0
  %165 = vmatpush1.msra.mxu0 0.0
  %166 = vmatprep.subr.mxu0 0.0
  %167 = vmatpush1.msra.mxu0 0.0
  %168 = vmatprep.subr.mxu0 0.0
  %169 = vmatpush1.msra.mxu0 0.0
  %170 = vmatprep.subr.mxu0 0.0
  %171 = vmatpush1.msra.mxu0 0.0
  %172 = vmatprep.mubr.f32.mxu0 0.0
  %173 = vmatmul.mubr.f32.gmra.mrb[0].mxu0 %v106
  %v174 = vpop.f32.mrb[0].mxu0
  %v175 = vadd.f32 %v96, %v174
  %v176 = vpop.f32.mrb[0].mxu0
  %177 = vdwg.mxu0
  %v178 = vxor.u32 %v175, 2147483648
  %v179 = vmul.f32 %v178, 1.442695
  %v180 = vpow.pop %v179
  %v181 = vadd.f32 %v180, 1.0
  %v182 = vrcp.pop %v181
  %v183 = vmul.f32 1.0, %v182
  %v184 = vmul.f32 %v183, 2.0
  %v185 = vsub.f32 %v184, 1.0
  %v186 = vmul.f32 %v183, 0.0
  %188 = vrot.lane.b32.xlu0 %v185, 80
  %v189 = vpop.permute.xlu0 %188
  %v191 = vmul.f32 %v183, %v189
  %193 = vrot.lane.b32.xlu0 %v191, 16
  %v194 = vpop.permute.xlu0 %193
  %v196 = vadd.f32 %v186, %v194
  %v197 = vtanh.pop %v196
  %199 = vrot.lane.b32.xlu0 %v197, 16
  %v200 = vpop.permute.xlu0 %199
  %v202 = vmul.f32 %v183, %v200
  %204 = vrot.lane.b32.xlu0 %v202, 96
  %v205 = vpop.permute.xlu0 %204
  %v206 = vsel %vm104, %v205, 0
  %208 = vmatprep.subr.mxu0 0.0
  %209 = vmatpush1.msra.mxu0 %v24
  %210 = vmatprep.subr.mxu0 0.0
  %211 = vmatpush1.msra.mxu0 %v25
  %212 = vmatprep.subr.mxu0 0.0
  %213 = vmatpush1.msra.mxu0 0.0
  %214 = vmatprep.subr.mxu0 0.0
  %215 = vmatpush1.msra.mxu0 0.0
  %216 = vmatprep.subr.mxu0 0.0
  %217 = vmatpush1.msra.mxu0 0.0
  %218 = vmatprep.subr.mxu0 0.0
  %219 = vmatpush1.msra.mxu0 0.0
  %220 = vmatprep.subr.mxu0 0.0
  %221 = vmatpush1.msra.mxu0 0.0
  %222 = vmatprep.subr.mxu0 0.0
  %223 = vmatpush1.msra.mxu0 0.0
  %224 = vmatprep.subr.mxu0 0.0
  %225 = vmatpush1.msra.mxu0 0.0
  %226 = vmatprep.subr.mxu0 0.0
  %227 = vmatpush1.msra.mxu0 0.0
  %228 = vmatprep.subr.mxu0 0.0
  %229 = vmatpush1.msra.mxu0 0.0
  %230 = vmatprep.subr.mxu0 0.0
  %231 = vmatpush1.msra.mxu0 0.0
  %232 = vmatprep.subr.mxu0 0.0
  %233 = vmatpush1.msra.mxu0 0.0
  %234 = vmatprep.subr.mxu0 0.0
  %235 = vmatpush1.msra.mxu0 0.0
  %236 = vmatprep.subr.mxu0 0.0
  %237 = vmatpush1.msra.mxu0 0.0
  %238 = vmatprep.subr.mxu0 0.0
  %239 = vmatpush1.msra.mxu0 0.0
  %240 = vmatprep.subr.mxu0 0.0
  %241 = vmatpush1.msra.mxu0 0.0
  %242 = vmatprep.subr.mxu0 0.0
  %243 = vmatpush1.msra.mxu0 0.0
  %244 = vmatprep.subr.mxu0 0.0
  %245 = vmatpush1.msra.mxu0 0.0
  %246 = vmatprep.subr.mxu0 0.0
  %247 = vmatpush1.msra.mxu0 0.0
  %248 = vmatprep.subr.mxu0 0.0
  %249 = vmatpush1.msra.mxu0 0.0
  %250 = vmatprep.subr.mxu0 0.0
  %251 = vmatpush1.msra.mxu0 0.0
  %252 = vmatprep.subr.mxu0 0.0
  %253 = vmatpush1.msra.mxu0 0.0
  %254 = vmatprep.subr.mxu0 0.0
  %255 = vmatpush1.msra.mxu0 0.0
  %256 = vmatprep.subr.mxu0 0.0
  %257 = vmatpush1.msra.mxu0 0.0
  %258 = vmatprep.subr.mxu0 0.0
  %259 = vmatpush1.msra.mxu0 0.0
  %260 = vmatprep.subr.mxu0 0.0
  %261 = vmatpush1.msra.mxu0 0.0
  %262 = vmatprep.subr.mxu0 0.0
  %263 = vmatpush1.msra.mxu0 0.0
  %264 = vmatprep.subr.mxu0 0.0
  %265 = vmatpush1.msra.mxu0 0.0
  %266 = vmatprep.subr.mxu0 0.0
  %267 = vmatpush1.msra.mxu0 0.0
  %268 = vmatprep.subr.mxu0 0.0
  %269 = vmatpush1.msra.mxu0 0.0
  %270 = vmatprep.subr.mxu0 0.0
  %271 = vmatpush1.msra.mxu0 0.0
  %272 = vmatprep.mubr.f32.mxu0 0.0
  %273 = vmatmul.mubr.f32.gmra.mrb[0].mxu0 %v206
  %v274 = vpop.f32.mrb[0].mxu0
  %v275 = vadd.f32 %v97, %v274
  %v276 = vpop.f32.mrb[0].mxu0
  %277 = vdwg.mxu0
  %v278 = vxor.u32 %v275, 2147483648
  %v279 = vmul.f32 %v278, 1.442695
  %v280 = vpow.pop %v279
  %v281 = vadd.f32 %v280, 1.0
  %v282 = vrcp.pop %v281
  %v283 = vmul.f32 1.0, %v282
  %v284 = vmul.f32 %v283, 2.0
  %v285 = vsub.f32 %v284, 1.0
  %v286 = vmul.f32 %v283, %v196
  %288 = vrot.lane.b32.xlu0 %v285, 80
  %v289 = vpop.permute.xlu0 %288
  %v291 = vmul.f32 %v283, %v289
  %293 = vrot.lane.b32.xlu0 %v291, 16
  %v294 = vpop.permute.xlu0 %293
  %v296 = vadd.f32 %v286, %v294
  %v297 = vtanh.pop %v296
  %299 = vrot.lane.b32.xlu0 %v297, 16
  %v300 = vpop.permute.xlu0 %299
  %v302 = vmul.f32 %v283, %v300
  %304 = vrot.lane.b32.xlu0 %v302, 96
  %v305 = vpop.permute.xlu0 %304
  %v306 = vsel %vm104, %v305, 0
  %308 = vmatprep.subr.mxu0 0.0
  %309 = vmatpush1.msra.mxu0 %v24
  %310 = vmatprep.subr.mxu0 0.0
  %311 = vmatpush1.msra.mxu0 %v25
  %312 = vmatprep.subr.mxu0 0.0
  %313 = vmatpush1.msra.mxu0 0.0
  %314 = vmatprep.subr.mxu0 0.0
  %315 = vmatpush1.msra.mxu0 0.0
  %316 = vmatprep.subr.mxu0 0.0
  %317 = vmatpush1.msra.mxu0 0.0
  %318 = vmatprep.subr.mxu0 0.0
  %319 = vmatpush1.msra.mxu0 0.0
  %320 = vmatprep.subr.mxu0 0.0
  %321 = vmatpush1.msra.mxu0 0.0
  %322 = vmatprep.subr.mxu0 0.0
  %323 = vmatpush1.msra.mxu0 0.0
  %324 = vmatprep.subr.mxu0 0.0
  %325 = vmatpush1.msra.mxu0 0.0
  %326 = vmatprep.subr.mxu0 0.0
  %327 = vmatpush1.msra.mxu0 0.0
  %328 = vmatprep.subr.mxu0 0.0
  %329 = vmatpush1.msra.mxu0 0.0
  %330 = vmatprep.subr.mxu0 0.0
  %331 = vmatpush1.msra.mxu0 0.0
  %332 = vmatprep.subr.mxu0 0.0
  %333 = vmatpush1.msra.mxu0 0.0
  %334 = vmatprep.subr.mxu0 0.0
  %335 = vmatpush1.msra.mxu0 0.0
  %336 = vmatprep.subr.mxu0 0.0
  %337 = vmatpush1.msra.mxu0 0.0
  %338 = vmatprep.subr.mxu0 0.0
  %339 = vmatpush1.msra.mxu0 0.0
  %340 = vmatprep.subr.mxu0 0.0
  %341 = vmatpush1.msra.mxu0 0.0
  %342 = vmatprep.subr.mxu0 0.0
  %343 = vmatpush1.msra.mxu0 0.0
  %344 = vmatprep.subr.mxu0 0.0
  %345 = vmatpush1.msra.mxu0 0.0
  %346 = vmatprep.subr.mxu0 0.0
  %347 = vmatpush1.msra.mxu0 0.0
  %348 = vmatprep.subr.mxu0 0.0
  %349 = vmatpush1.msra.mxu0 0.0
  %350 = vmatprep.subr.mxu0 0.0
  %351 = vmatpush1.msra.mxu0 0.0
  %352 = vmatprep.subr.mxu0 0.0
  %353 = vmatpush1.msra.mxu0 0.0
  %354 = vmatprep.subr.mxu0 0.0
  %355 = vmatpush1.msra.mxu0 0.0
  %356 = vmatprep.subr.mxu0 0.0
  %357 = vmatpush1.msra.mxu0 0.0
  %358 = vmatprep.subr.mxu0 0.0
  %359 = vmatpush1.msra.mxu0 0.0
  %360 = vmatprep.subr.mxu0 0.0
  %361 = vmatpush1.msra.mxu0 0.0
  %362 = vmatprep.subr.mxu0 0.0
  %363 = vmatpush1.msra.mxu0 0.0
  %364 = vmatprep.subr.mxu0 0.0
  %365 = vmatpush1.msra.mxu0 0.0
  %366 = vmatprep.subr.mxu0 0.0
  %367 = vmatpush1.msra.mxu0 0.0
  %368 = vmatprep.subr.mxu0 0.0
  %369 = vmatpush1.msra.mxu0 0.0
  %370 = vmatprep.subr.mxu0 0.0
  %371 = vmatpush1.msra.mxu0 0.0
  %372 = vmatprep.mubr.f32.mxu0 0.0
  %373 = vmatmul.mubr.f32.gmra.mrb[0].mxu0 %v306
  %v374 = vpop.f32.mrb[0].mxu0
  %v375 = vadd.f32 %v98, %v374
  %v376 = vpop.f32.mrb[0].mxu0
  %377 = vdwg.mxu0
  %v378 = vxor.u32 %v375, 2147483648
  %v379 = vmul.f32 %v378, 1.442695
  %v380 = vpow.pop %v379
  %v381 = vadd.f32 %v380, 1.0
  %v382 = vrcp.pop %v381
  %v383 = vmul.f32 1.0, %v382
  %v384 = vmul.f32 %v383, 2.0
  %v385 = vsub.f32 %v384, 1.0
  %v386 = vmul.f32 %v383, %v296
  %388 = vrot.lane.b32.xlu0 %v385, 80
  %v389 = vpop.permute.xlu0 %388
  %v391 = vmul.f32 %v383, %v389
  %393 = vrot.lane.b32.xlu0 %v391, 16
  %v394 = vpop.permute.xlu0 %393
  %v396 = vadd.f32 %v386, %v394
  %v397 = vtanh.pop %v396
  %399 = vrot.lane.b32.xlu0 %v397, 16
  %v400 = vpop.permute.xlu0 %399
  %v402 = vmul.f32 %v383, %v400
  %404 = vrot.lane.b32.xlu0 %v402, 96
  %v405 = vpop.permute.xlu0 %404
  %v406 = vsel %vm104, %v405, 0
  %408 = vmatprep.subr.mxu0 0.0
  %409 = vmatpush1.msra.mxu0 %v24
  %410 = vmatprep.subr.mxu0 0.0
  %411 = vmatpush1.msra.mxu0 %v25
  %412 = vmatprep.subr.mxu0 0.0
  %413 = vmatpush1.msra.mxu0 0.0
  %414 = vmatprep.subr.mxu0 0.0
  %415 = vmatpush1.msra.mxu0 0.0
  %416 = vmatprep.subr.mxu0 0.0
  %417 = vmatpush1.msra.mxu0 0.0
  %418 = vmatprep.subr.mxu0 0.0
  %419 = vmatpush1.msra.mxu0 0.0
  %420 = vmatprep.subr.mxu0 0.0
  %421 = vmatpush1.msra.mxu0 0.0
  %422 = vmatprep.subr.mxu0 0.0
  %423 = vmatpush1.msra.mxu0 0.0
  %424 = vmatprep.subr.mxu0 0.0
  %425 = vmatpush1.msra.mxu0 0.0
  %426 = vmatprep.subr.mxu0 0.0
  %427 = vmatpush1.msra.mxu0 0.0
  %428 = vmatprep.subr.mxu0 0.0
  %429 = vmatpush1.msra.mxu0 0.0
  %430 = vmatprep.subr.mxu0 0.0
  %431 = vmatpush1.msra.mxu0 0.0
  %432 = vmatprep.subr.mxu0 0.0
  %433 = vmatpush1.msra.mxu0 0.0
  %434 = vmatprep.subr.mxu0 0.0
  %435 = vmatpush1.msra.mxu0 0.0
  %436 = vmatprep.subr.mxu0 0.0
  %437 = vmatpush1.msra.mxu0 0.0
  %438 = vmatprep.subr.mxu0 0.0
  %439 = vmatpush1.msra.mxu0 0.0
  %440 = vmatprep.subr.mxu0 0.0
  %441 = vmatpush1.msra.mxu0 0.0
  %442 = vmatprep.subr.mxu0 0.0
  %443 = vmatpush1.msra.mxu0 0.0
  %444 = vmatprep.subr.mxu0 0.0
  %445 = vmatpush1.msra.mxu0 0.0
  %446 = vmatprep.subr.mxu0 0.0
  %447 = vmatpush1.msra.mxu0 0.0
  %448 = vmatprep.subr.mxu0 0.0
  %449 = vmatpush1.msra.mxu0 0.0
  %450 = vmatprep.subr.mxu0 0.0
  %451 = vmatpush1.msra.mxu0 0.0
  %452 = vmatprep.subr.mxu0 0.0
  %453 = vmatpush1.msra.mxu0 0.0
  %454 = vmatprep.subr.mxu0 0.0
  %455 = vmatpush1.msra.mxu0 0.0
  %456 = vmatprep.subr.mxu0 0.0
  %457 = vmatpush1.msra.mxu0 0.0
  %458 = vmatprep.subr.mxu0 0.0
  %459 = vmatpush1.msra.mxu0 0.0
  %460 = vmatprep.subr.mxu0 0.0
  %461 = vmatpush1.msra.mxu0 0.0
  %462 = vmatprep.subr.mxu0 0.0
  %463 = vmatpush1.msra.mxu0 0.0
  %464 = vmatprep.subr.mxu0 0.0
  %465 = vmatpush1.msra.mxu0 0.0
  %466 = vmatprep.subr.mxu0 0.0
  %467 = vmatpush1.msra.mxu0 0.0
  %468 = vmatprep.subr.mxu0 0.0
  %469 = vmatpush1.msra.mxu0 0.0
  %470 = vmatprep.subr.mxu0 0.0
  %471 = vmatpush1.msra.mxu0 0.0
  %472 = vmatprep.mubr.f32.mxu0 0.0
  %473 = vmatmul.mubr.f32.gmra.mrb[0].mxu0 %v406
  %v474 = vpop.f32.mrb[0].mxu0
  %v475 = vadd.f32 %v99, %v474
  %v476 = vpop.f32.mrb[0].mxu0
  %477 = vdwg.mxu0
  %v478 = vxor.u32 %v475, 2147483648
  %v479 = vmul.f32 %v478, 1.442695
  %v480 = vpow.pop %v479
  %v481 = vadd.f32 %v480, 1.0
  %v482 = vrcp.pop %v481
  %v483 = vmul.f32 1.0, %v482
  %v484 = vmul.f32 %v483, 2.0
  %v485 = vsub.f32 %v484, 1.0
  %v486 = vmul.f32 %v483, %v396
  %488 = vrot.lane.b32.xlu0 %v485, 80
  %v489 = vpop.permute.xlu0 %488
  %v491 = vmul.f32 %v483, %v489
  %493 = vrot.lane.b32.xlu0 %v491, 16
  %v494 = vpop.permute.xlu0 %493
  %v496 = vadd.f32 %v486, %v494
  %v497 = vtanh.pop %v496
  %499 = vrot.lane.b32.xlu0 %v497, 16
  %v500 = vpop.permute.xlu0 %499
  %v502 = vmul.f32 %v483, %v500
  %504 = vrot.lane.b32.xlu0 %v502, 96
  %v505 = vpop.permute.xlu0 %504
  %v506 = vsel %vm104, %v505, 0
  %508 = vmatprep.subr.mxu0 0.0
  %509 = vmatpush1.msra.mxu0 %v24
  %510 = vmatprep.subr.mxu0 0.0
  %511 = vmatpush1.msra.mxu0 %v25
  %512 = vmatprep.subr.mxu0 0.0
  %513 = vmatpush1.msra.mxu0 0.0
  %514 = vmatprep.subr.mxu0 0.0
  %515 = vmatpush1.msra.mxu0 0.0
  %516 = vmatprep.subr.mxu0 0.0
  %517 = vmatpush1.msra.mxu0 0.0
  %518 = vmatprep.subr.mxu0 0.0
  %519 = vmatpush1.msra.mxu0 0.0
  %520 = vmatprep.subr.mxu0 0.0
  %521 = vmatpush1.msra.mxu0 0.0
  %522 = vmatprep.subr.mxu0 0.0
  %523 = vmatpush1.msra.mxu0 0.0
  %524 = vmatprep.subr.mxu0 0.0
  %525 = vmatpush1.msra.mxu0 0.0
  %526 = vmatprep.subr.mxu0 0.0
  %527 = vmatpush1.msra.mxu0 0.0
  %528 = vmatprep.subr.mxu0 0.0
  %529 = vmatpush1.msra.mxu0 0.0
  %530 = vmatprep.subr.mxu0 0.0
  %531 = vmatpush1.msra.mxu0 0.0
  %532 = vmatprep.subr.mxu0 0.0
  %533 = vmatpush1.msra.mxu0 0.0
  %534 = vmatprep.subr.mxu0 0.0
  %535 = vmatpush1.msra.mxu0 0.0
  %536 = vmatprep.subr.mxu0 0.0
  %537 = vmatpush1.msra.mxu0 0.0
  %538 = vmatprep.subr.mxu0 0.0
  %539 = vmatpush1.msra.mxu0 0.0
  %540 = vmatprep.subr.mxu0 0.0
  %541 = vmatpush1.msra.mxu0 0.0
  %542 = vmatprep.subr.mxu0 0.0
  %543 = vmatpush1.msra.mxu0 0.0
  %544 = vmatprep.subr.mxu0 0.0
  %545 = vmatpush1.msra.mxu0 0.0
  %546 = vmatprep.subr.mxu0 0.0
  %547 = vmatpush1.msra.mxu0 0.0
  %548 = vmatprep.subr.mxu0 0.0
  %549 = vmatpush1.msra.mxu0 0.0
  %550 = vmatprep.subr.mxu0 0.0
  %551 = vmatpush1.msra.mxu0 0.0
  %552 = vmatprep.subr.mxu0 0.0
  %553 = vmatpush1.msra.mxu0 0.0
  %554 = vmatprep.subr.mxu0 0.0
  %555 = vmatpush1.msra.mxu0 0.0
  %556 = vmatprep.subr.mxu0 0.0
  %557 = vmatpush1.msra.mxu0 0.0
  %558 = vmatprep.subr.mxu0 0.0
  %559 = vmatpush1.msra.mxu0 0.0
  %560 = vmatprep.subr.mxu0 0.0
  %561 = vmatpush1.msra.mxu0 0.0
  %562 = vmatprep.subr.mxu0 0.0
  %563 = vmatpush1.msra.mxu0 0.0
  %564 = vmatprep.subr.mxu0 0.0
  %565 = vmatpush1.msra.mxu0 0.0
  %566 = vmatprep.subr.mxu0 0.0
  %567 = vmatpush1.msra.mxu0 0.0
  %568 = vmatprep.subr.mxu0 0.0
  %569 = vmatpush1.msra.mxu0 0.0
  %570 = vmatprep.subr.mxu0 0.0
  %571 = vmatpush1.msra.mxu0 0.0
  %572 = vmatprep.mubr.f32.mxu0 0.0
  %573 = vmatmul.mubr.f32.gmra.mrb[0].mxu0 %v506
  %v574 = vpop.f32.mrb[0].mxu0
  %v575 = vadd.f32 %v100, %v574
  %v576 = vpop.f32.mrb[0].mxu0
  %577 = vdwg.mxu0
  %v578 = vxor.u32 %v575, 2147483648
  %v579 = vmul.f32 %v578, 1.442695
  %v580 = vpow.pop %v579
  %v581 = vadd.f32 %v580, 1.0
  %v582 = vrcp.pop %v581
  %v583 = vmul.f32 1.0, %v582
  %v584 = vmul.f32 %v583, 2.0
  %v585 = vsub.f32 %v584, 1.0
  %v586 = vmul.f32 %v583, %v496
  %588 = vrot.lane.b32.xlu0 %v585, 80
  %v589 = vpop.permute.xlu0 %588
  %v591 = vmul.f32 %v583, %v589
  %593 = vrot.lane.b32.xlu0 %v591, 16
  %v594 = vpop.permute.xlu0 %593
  %v596 = vadd.f32 %v586, %v594
  %v597 = vtanh.pop %v596
  %599 = vrot.lane.b32.xlu0 %v597, 16
  %v600 = vpop.permute.xlu0 %599
  %v602 = vmul.f32 %v583, %v600
  %604 = vrot.lane.b32.xlu0 %v602, 96
  %v605 = vpop.permute.xlu0 %604
  %v606 = vsel %vm104, %v605, 0
  %608 = vmatprep.subr.mxu0 0.0
  %609 = vmatpush1.msra.mxu0 %v24
  %610 = vmatprep.subr.mxu0 0.0
  %611 = vmatpush1.msra.mxu0 %v25
  %612 = vmatprep.subr.mxu0 0.0
  %613 = vmatpush1.msra.mxu0 0.0
  %614 = vmatprep.subr.mxu0 0.0
  %615 = vmatpush1.msra.mxu0 0.0
  %616 = vmatprep.subr.mxu0 0.0
  %617 = vmatpush1.msra.mxu0 0.0
  %618 = vmatprep.subr.mxu0 0.0
  %619 = vmatpush1.msra.mxu0 0.0
  %620 = vmatprep.subr.mxu0 0.0
  %621 = vmatpush1.msra.mxu0 0.0
  %622 = vmatprep.subr.mxu0 0.0
  %623 = vmatpush1.msra.mxu0 0.0
  %624 = vmatprep.subr.mxu0 0.0
  %625 = vmatpush1.msra.mxu0 0.0
  %626 = vmatprep.subr.mxu0 0.0
  %627 = vmatpush1.msra.mxu0 0.0
  %628 = vmatprep.subr.mxu0 0.0
  %629 = vmatpush1.msra.mxu0 0.0
  %630 = vmatprep.subr.mxu0 0.0
  %631 = vmatpush1.msra.mxu0 0.0
  %632 = vmatprep.subr.mxu0 0.0
  %633 = vmatpush1.msra.mxu0 0.0
  %634 = vmatprep.subr.mxu0 0.0
  %635 = vmatpush1.msra.mxu0 0.0
  %636 = vmatprep.subr.mxu0 0.0
  %637 = vmatpush1.msra.mxu0 0.0
  %638 = vmatprep.subr.mxu0 0.0
  %639 = vmatpush1.msra.mxu0 0.0
  %640 = vmatprep.subr.mxu0 0.0
  %641 = vmatpush1.msra.mxu0 0.0
  %642 = vmatprep.subr.mxu0 0.0
  %643 = vmatpush1.msra.mxu0 0.0
  %644 = vmatprep.subr.mxu0 0.0
  %645 = vmatpush1.msra.mxu0 0.0
  %646 = vmatprep.subr.mxu0 0.0
  %647 = vmatpush1.msra.mxu0 0.0
  %648 = vmatprep.subr.mxu0 0.0
  %649 = vmatpush1.msra.mxu0 0.0
  %650 = vmatprep.subr.mxu0 0.0
  %651 = vmatpush1.msra.mxu0 0.0
  %652 = vmatprep.subr.mxu0 0.0
  %653 = vmatpush1.msra.mxu0 0.0
  %654 = vmatprep.subr.mxu0 0.0
  %655 = vmatpush1.msra.mxu0 0.0
  %656 = vmatprep.subr.mxu0 0.0
  %657 = vmatpush1.msra.mxu0 0.0
  %658 = vmatprep.subr.mxu0 0.0
  %659 = vmatpush1.msra.mxu0 0.0
  %660 = vmatprep.subr.mxu0 0.0
  %661 = vmatpush1.msra.mxu0 0.0
  %662 = vmatprep.subr.mxu0 0.0
  %663 = vmatpush1.msra.mxu0 0.0
  %664 = vmatprep.subr.mxu0 0.0
  %665 = vmatpush1.msra.mxu0 0.0
  %666 = vmatprep.subr.mxu0 0.0
  %667 = vmatpush1.msra.mxu0 0.0
  %668 = vmatprep.subr.mxu0 0.0
  %669 = vmatpush1.msra.mxu0 0.0
  %670 = vmatprep.subr.mxu0 0.0
  %671 = vmatpush1.msra.mxu0 0.0
  %672 = vmatprep.mubr.f32.mxu0 0.0
  %673 = vmatmul.mubr.f32.gmra.mrb[0].mxu0 %v606
  %v674 = vpop.f32.mrb[0].mxu0
  %v675 = vadd.f32 %v101, %v674
  %v676 = vpop.f32.mrb[0].mxu0
  %677 = vdwg.mxu0
  %v678 = vxor.u32 %v675, 2147483648
  %v679 = vmul.f32 %v678, 1.442695
  %v680 = vpow.pop %v679
  %v681 = vadd.f32 %v680, 1.0
  %v682 = vrcp.pop %v681
  %v683 = vmul.f32 1.0, %v682
  %v684 = vmul.f32 %v683, 2.0
  %v685 = vsub.f32 %v684, 1.0
  %v686 = vmul.f32 %v683, %v596
  %688 = vrot.lane.b32.xlu0 %v685, 80
  %v689 = vpop.permute.xlu0 %688
  %v691 = vmul.f32 %v683, %v689
  %693 = vrot.lane.b32.xlu0 %v691, 16
  %v694 = vpop.permute.xlu0 %693
  %v696 = vadd.f32 %v686, %v694
  %v697 = vtanh.pop %v696
  %699 = vrot.lane.b32.xlu0 %v697, 16
  %v700 = vpop.permute.xlu0 %699
  %v702 = vmul.f32 %v683, %v700
  %704 = vrot.lane.b32.xlu0 %v702, 96
  %v705 = vpop.permute.xlu0 %704
  %v706 = vsel %vm104, %v705, 0
  %708 = vmatprep.subr.mxu0 0.0
  %709 = vmatpush1.msra.mxu0 %v24
  %710 = vmatprep.subr.mxu0 0.0
  %711 = vmatpush1.msra.mxu0 %v25
  %712 = vmatprep.subr.mxu0 0.0
  %713 = vmatpush1.msra.mxu0 0.0
  %714 = vmatprep.subr.mxu0 0.0
  %715 = vmatpush1.msra.mxu0 0.0
  %716 = vmatprep.subr.mxu0 0.0
  %717 = vmatpush1.msra.mxu0 0.0
  %718 = vmatprep.subr.mxu0 0.0
  %719 = vmatpush1.msra.mxu0 0.0
  %720 = vmatprep.subr.mxu0 0.0
  %721 = vmatpush1.msra.mxu0 0.0
  %722 = vmatprep.subr.mxu0 0.0
  %723 = vmatpush1.msra.mxu0 0.0
  %724 = vmatprep.subr.mxu0 0.0
  %725 = vmatpush1.msra.mxu0 0.0
  %726 = vmatprep.subr.mxu0 0.0
  %727 = vmatpush1.msra.mxu0 0.0
  %728 = vmatprep.subr.mxu0 0.0
  %729 = vmatpush1.msra.mxu0 0.0
  %730 = vmatprep.subr.mxu0 0.0
  %731 = vmatpush1.msra.mxu0 0.0
  %732 = vmatprep.subr.mxu0 0.0
  %733 = vmatpush1.msra.mxu0 0.0
  %734 = vmatprep.subr.mxu0 0.0
  %735 = vmatpush1.msra.mxu0 0.0
  %736 = vmatprep.subr.mxu0 0.0
  %737 = vmatpush1.msra.mxu0 0.0
  %738 = vmatprep.subr.mxu0 0.0
  %739 = vmatpush1.msra.mxu0 0.0
  %740 = vmatprep.subr.mxu0 0.0
  %741 = vmatpush1.msra.mxu0 0.0
  %742 = vmatprep.subr.mxu0 0.0
  %743 = vmatpush1.msra.mxu0 0.0
  %744 = vmatprep.subr.mxu0 0.0
  %745 = vmatpush1.msra.mxu0 0.0
  %746 = vmatprep.subr.mxu0 0.0
  %747 = vmatpush1.msra.mxu0 0.0
  %748 = vmatprep.subr.mxu0 0.0
  %749 = vmatpush1.msra.mxu0 0.0
  %750 = vmatprep.subr.mxu0 0.0
  %751 = vmatpush1.msra.mxu0 0.0
  %752 = vmatprep.subr.mxu0 0.0
  %753 = vmatpush1.msra.mxu0 0.0
  %754 = vmatprep.subr.mxu0 0.0
  %755 = vmatpush1.msra.mxu0 0.0
  %756 = vmatprep.subr.mxu0 0.0
  %757 = vmatpush1.msra.mxu0 0.0
  %758 = vmatprep.subr.mxu0 0.0
  %759 = vmatpush1.msra.mxu0 0.0
  %760 = vmatprep.subr.mxu0 0.0
  %761 = vmatpush1.msra.mxu0 0.0
  %762 = vmatprep.subr.mxu0 0.0
  %763 = vmatpush1.msra.mxu0 0.0
  %764 = vmatprep.subr.mxu0 0.0
  %765 = vmatpush1.msra.mxu0 0.0
  %766 = vmatprep.subr.mxu0 0.0
  %767 = vmatpush1.msra.mxu0 0.0
  %768 = vmatprep.subr.mxu0 0.0
  %769 = vmatpush1.msra.mxu0 0.0
  %770 = vmatprep.subr.mxu0 0.0
  %771 = vmatpush1.msra.mxu0 0.0
  %772 = vmatprep.mubr.f32.mxu0 0.0
  %773 = vmatmul.mubr.f32.gmra.mrb[0].mxu0 %v706
  %v774 = vpop.f32.mrb[0].mxu0
  %v775 = vadd.f32 %v102, %v774
  %v776 = vpop.f32.mrb[0].mxu0
  %777 = vdwg.mxu0
  %v778 = vxor.u32 %v775, 2147483648
  %v779 = vmul.f32 %v778, 1.442695
  %v780 = vpow.pop %v779
  %v781 = vadd.f32 %v780, 1.0
  %v782 = vrcp.pop %v781
  %v783 = vmul.f32 1.0, %v782
  %v784 = vmul.f32 %v783, 2.0
  %v785 = vsub.f32 %v784, 1.0
  %v786 = vmul.f32 %v783, %v696
  %788 = vrot.lane.b32.xlu0 %v785, 80
  %v789 = vpop.permute.xlu0 %788
  %v791 = vmul.f32 %v783, %v789
  %793 = vrot.lane.b32.xlu0 %v791, 16
  %v794 = vpop.permute.xlu0 %793
  %v796 = vadd.f32 %v786, %v794
  %v797 = vtanh.pop %v796
  %799 = vrot.lane.b32.xlu0 %v797, 16
  %v800 = vpop.permute.xlu0 %799
  %v802 = vmul.f32 %v783, %v800
  %804 = vrot.lane.b32.xlu0 %v802, 96
  %v805 = vpop.permute.xlu0 %804
  %v806 = vsel %vm104, %v805, 0
  %808 = vmatprep.subr.mxu0 0.0
  %809 = vmatpush1.msra.mxu0 %v24
  %810 = vmatprep.subr.mxu0 0.0
  %811 = vmatpush1.msra.mxu0 %v25
  %812 = vmatprep.subr.mxu0 0.0
  %813 = vmatpush1.msra.mxu0 0.0
  %814 = vmatprep.subr.mxu0 0.0
  %815 = vmatpush1.msra.mxu0 0.0
  %816 = vmatprep.subr.mxu0 0.0
  %817 = vmatpush1.msra.mxu0 0.0
  %818 = vmatprep.subr.mxu0 0.0
  %819 = vmatpush1.msra.mxu0 0.0
  %820 = vmatprep.subr.mxu0 0.0
  %821 = vmatpush1.msra.mxu0 0.0
  %822 = vmatprep.subr.mxu0 0.0
  %823 = vmatpush1.msra.mxu0 0.0
  %824 = vmatprep.subr.mxu0 0.0
  %825 = vmatpush1.msra.mxu0 0.0
  %826 = vmatprep.subr.mxu0 0.0
  %827 = vmatpush1.msra.mxu0 0.0
  %828 = vmatprep.subr.mxu0 0.0
  %829 = vmatpush1.msra.mxu0 0.0
  %830 = vmatprep.subr.mxu0 0.0
  %831 = vmatpush1.msra.mxu0 0.0
  %832 = vmatprep.subr.mxu0 0.0
  %833 = vmatpush1.msra.mxu0 0.0
  %834 = vmatprep.subr.mxu0 0.0
  %835 = vmatpush1.msra.mxu0 0.0
  %836 = vmatprep.subr.mxu0 0.0
  %837 = vmatpush1.msra.mxu0 0.0
  %838 = vmatprep.subr.mxu0 0.0
  %839 = vmatpush1.msra.mxu0 0.0
  %840 = vmatprep.subr.mxu0 0.0
  %841 = vmatpush1.msra.mxu0 0.0
  %842 = vmatprep.subr.mxu0 0.0
  %843 = vmatpush1.msra.mxu0 0.0
  %844 = vmatprep.subr.mxu0 0.0
  %845 = vmatpush1.msra.mxu0 0.0
  %846 = vmatprep.subr.mxu0 0.0
  %847 = vmatpush1.msra.mxu0 0.0
  %848 = vmatprep.subr.mxu0 0.0
  %849 = vmatpush1.msra.mxu0 0.0
  %850 = vmatprep.subr.mxu0 0.0
  %851 = vmatpush1.msra.mxu0 0.0
  %852 = vmatprep.subr.mxu0 0.0
  %853 = vmatpush1.msra.mxu0 0.0
  %854 = vmatprep.subr.mxu0 0.0
  %855 = vmatpush1.msra.mxu0 0.0
  %856 = vmatprep.subr.mxu0 0.0
  %857 = vmatpush1.msra.mxu0 0.0
  %858 = vmatprep.subr.mxu0 0.0
  %859 = vmatpush1.msra.mxu0 0.0
  %860 = vmatprep.subr.mxu0 0.0
  %861 = vmatpush1.msra.mxu0 0.0
  %862 = vmatprep.subr.mxu0 0.0
  %863 = vmatpush1.msra.mxu0 0.0
  %864 = vmatprep.subr.mxu0 0.0
  %865 = vmatpush1.msra.mxu0 0.0
  %866 = vmatprep.subr.mxu0 0.0
  %867 = vmatpush1.msra.mxu0 0.0
  %868 = vmatprep.subr.mxu0 0.0
  %869 = vmatpush1.msra.mxu0 0.0
  %870 = vmatprep.subr.mxu0 0.0
  %871 = vmatpush1.msra.mxu0 0.0
  %872 = vmatprep.mubr.f32.mxu0 0.0
  %873 = vmatmul.mubr.f32.gmra.mrb[0].mxu0 %v806
  %v874 = vpop.f32.mrb[0].mxu0
  %v875 = vadd.f32 %v103, %v874
  %v876 = vpop.f32.mrb[0].mxu0
  %877 = vdwg.mxu0
  %v878 = vxor.u32 %v875, 2147483648
  %v879 = vmul.f32 %v878, 1.442695
  %v880 = vpow.pop %v879
  %v881 = vadd.f32 %v880, 1.0
  %v882 = vrcp.pop %v881
  %v883 = vmul.f32 1.0, %v882
  %v884 = vmul.f32 %v883, 2.0
  %v885 = vsub.f32 %v884, 1.0
  %v886 = vmul.f32 %v883, %v796
  %888 = vrot.lane.b32.xlu0 %v885, 80
  %v889 = vpop.permute.xlu0 %888
  %v891 = vmul.f32 %v883, %v889
  %893 = vrot.lane.b32.xlu0 %v891, 16
  %v894 = vpop.permute.xlu0 %893
  %v896 = vadd.f32 %v886, %v894
  %v897 = vtanh.pop %v896
  %899 = vrot.lane.b32.xlu0 %v897, 16
  %v900 = vpop.permute.xlu0 %899
  %v902 = vmul.f32 %v883, %v900
  %v903 = vld [vmem:[%s4] sm:$0xff]
  %v904 = vld [vmem:[%s4 + $0x8] sm:$0xff]
  %s905 = sld [smem:[#allocation2]]
  %v906 = vstv %s905
  %908 = vrot.lane.b32.xlu0 %v902, 96
  %v909 = vpop.permute.xlu0 %908
  %v910 = vsel %vm104, %v909, 0
  %912 = vmatprep.subr.mxu0 0.0
  %913 = vmatpush1.msra.mxu0 %v903
  %914 = vmatprep.subr.mxu0 0.0
  %915 = vmatpush1.msra.mxu0 %v904
  %916 = vmatprep.subr.mxu0 0.0
  %917 = vmatpush1.msra.mxu0 0.0
  %918 = vmatprep.subr.mxu0 0.0
  %919 = vmatpush1.msra.mxu0 0.0
  %920 = vmatprep.subr.mxu0 0.0
  %921 = vmatpush1.msra.mxu0 0.0
  %922 = vmatprep.subr.mxu0 0.0
  %923 = vmatpush1.msra.mxu0 0.0
  %924 = vmatprep.subr.mxu0 0.0
  %925 = vmatpush1.msra.mxu0 0.0
  %926 = vmatprep.subr.mxu0 0.0
  %927 = vmatpush1.msra.mxu0 0.0
  %928 = vmatprep.subr.mxu0 0.0
  %929 = vmatpush1.msra.mxu0 0.0
  %930 = vmatprep.subr.mxu0 0.0
  %931 = vmatpush1.msra.mxu0 0.0
  %932 = vmatprep.subr.mxu0 0.0
  %933 = vmatpush1.msra.mxu0 0.0
  %934 = vmatprep.subr.mxu0 0.0
  %935 = vmatpush1.msra.mxu0 0.0
  %936 = vmatprep.subr.mxu0 0.0
  %937 = vmatpush1.msra.mxu0 0.0
  %938 = vmatprep.subr.mxu0 0.0
  %939 = vmatpush1.msra.mxu0 0.0
  %940 = vmatprep.subr.mxu0 0.0
  %941 = vmatpush1.msra.mxu0 0.0
  %942 = vmatprep.subr.mxu0 0.0
  %943 = vmatpush1.msra.mxu0 0.0
  %944 = vmatprep.subr.mxu0 0.0
  %945 = vmatpush1.msra.mxu0 0.0
  %946 = vmatprep.subr.mxu0 0.0
  %947 = vmatpush1.msra.mxu0 0.0
  %948 = vmatprep.subr.mxu0 0.0
  %949 = vmatpush1.msra.mxu0 0.0
  %950 = vmatprep.subr.mxu0 0.0
  %951 = vmatpush1.msra.mxu0 0.0
  %952 = vmatprep.subr.mxu0 0.0
  %953 = vmatpush1.msra.mxu0 0.0
  %954 = vmatprep.subr.mxu0 0.0
  %955 = vmatpush1.msra.mxu0 0.0
  %956 = vmatprep.subr.mxu0 0.0
  %957 = vmatpush1.msra.mxu0 0.0
  %958 = vmatprep.subr.mxu0 0.0
  %959 = vmatpush1.msra.mxu0 0.0
  %960 = vmatprep.subr.mxu0 0.0
  %961 = vmatpush1.msra.mxu0 0.0
  %962 = vmatprep.subr.mxu0 0.0
  %963 = vmatpush1.msra.mxu0 0.0
  %964 = vmatprep.subr.mxu0 0.0
  %965 = vmatpush1.msra.mxu0 0.0
  %966 = vmatprep.subr.mxu0 0.0
  %967 = vmatpush1.msra.mxu0 0.0
  %968 = vmatprep.subr.mxu0 0.0
  %969 = vmatpush1.msra.mxu0 0.0
  %970 = vmatprep.subr.mxu0 0.0
  %971 = vmatpush1.msra.mxu0 0.0
  %972 = vmatprep.subr.mxu0 0.0
  %973 = vmatpush1.msra.mxu0 0.0
  %974 = vmatprep.subr.mxu0 0.0
  %975 = vmatpush1.msra.mxu0 0.0
  %976 = vmatprep.mubr.f32.mxu0 0.0
  %977 = vmatmul.mubr.f32.gmra.mrb[0].mxu0 %v910
  %v978 = vpop.f32.mrb[0].mxu0
  %v979 = vadd.f32 %v906, %v978
  %v980 = vpop.f32.mrb[0].mxu0
  %981 = vdwg.mxu0
  %vm982 = vcmask 1024
  %983 = vst.msk [vmem:[%s6] sm:$0x3] %vm982, %v979
  // Predicated region
  $region26: #{tpu_custom_call.1} parent=0 // pred_check
    _
  $region27: #{tpu_custom_call.1} parent=0 // pred_check_branch
    %985 = sbr.rel (0) target = $region29
  $region28: #{tpu_custom_call.1} parent=0 // pred_region
    _
  $region29: #{tpu_custom_call.1} parent=0 // pred_fallthru
    _
  // Predicated region
  $region30: #{tpu_custom_call.1} parent=0 // pred_check
    _
  $region31: #{tpu_custom_call.1} parent=0 // pred_check_branch
    %987 = sbr.rel (0) target = $region33
  $region32: #{tpu_custom_call.1} parent=0 // pred_region
    _
  $region33: #{tpu_custom_call.1} parent=0 // pred_fallthru
    _

</llo_original>
